<compile_context>
chip_gen: v6e
topology: v6e:2x2x1
jax: 0.10.0
libtpu: 0.0.40
codegen_flags: <defaults>
</compile_context>

<pallas_src>
import functools
import math

import jax
import jax.numpy as jnp
from jax import lax
from jax.experimental import pallas as pl
from jax.experimental.pallas import tpu as pltpu

LANE = 128


def _round_up(x, m):
    return ((x + m - 1) // m) * m


def _row_mean(h, true_n):
    """Row mean over the first `true_n` columns of h (remaining columns are lane padding)."""
    if h.shape[1] == true_n:
        s = jnp.sum(h, axis=1, keepdims=True)
    else:
        col = lax.broadcasted_iota(jnp.int32, h.shape, 1)
        s = jnp.sum(jnp.where(col < true_n, h, 0.0), axis=1, keepdims=True)
    return s * (1.0 / true_n)


def _make_mlp_kernel(num_layers, zerocenter, true_out_dims, mxu_dtype):
    """Whole forward pass fused into one Pallas kernel body (runs per batch tile)."""

    def kernel(*refs):
        x_ref = refs[0]
        out_ref = refs[-1]
        p = refs[1:-1]  # interleaved: wT0, b0, wT1, b1, ...

        h = x_ref[...].astype(jnp.float32)
        for i in range(num_layers):
            w = p[2 * i][...]        # (in_pad, out_pad), mxu_dtype (bf16 or f32)
            b = p[2 * i + 1][...]    # (1, out_pad), f32 (zero in padded lanes)
            h = jnp.dot(h.astype(mxu_dtype), w,
                        preferred_element_type=jnp.float32) + b
            if i < num_layers - 1:   # hidden layers only
                true_n = true_out_dims[i]
                if zerocenter:
                    h = h - _row_mean(h, true_n)
                h = jnp.maximum(h, 0.0)
                if zerocenter:
                    h = h - _row_mean(h, true_n)
            # Junk in padded lanes is harmless: the next layer's padded weight rows are 0.
        out_ref[...] = h.astype(out_ref.dtype)

    return kernel


def init_qnetwork_params(key, input_dim, output_dim, hiddens=(64,)):
    """Deterministic init mirroring PyTorch nn.Linear (uniform +-1/sqrt(fan_in))."""
    dims = [input_dim] + list(hiddens) + [output_dim]
    params = []
    for i in range(len(dims) - 1):
        fan_in, fan_out = dims[i], dims[i + 1]
        key, kw, kb = jax.random.split(key, 3)
        bound = 1.0 / math.sqrt(fan_in)
        w = jax.random.uniform(kw, (fan_out, fan_in), jnp.float32, -bound, bound)
        b = jax.random.uniform(kb, (fan_out,), jnp.float32, -bound, bound)
        params.append((w, b))
    return params


def prepare_params(params, mxu_dtype=jnp.bfloat16, lane=LANE):
    """One-time prep (outside jit): transpose to (in,out), zero-pad output dims (and
    chained input dims) to lane multiples, cast weights to the MXU dtype."""
    prepped = []
    prev_pad = None
    for li, (w, b) in enumerate(params):
        out_f, in_f = w.shape
        w_t = jnp.asarray(w, jnp.float32).T              # (in, out)
        in_pad = in_f if li == 0 else prev_pad           # first layer keeps natural K
        out_pad = _round_up(out_f, lane)
        w_p = jnp.zeros((in_pad, out_pad), jnp.float32).at[:in_f, :out_f].set(w_t)
        b_p = jnp.zeros((1, out_pad), jnp.float32).at[:, :out_f].set(
            jnp.asarray(b, jnp.float32))
        prepped.append((w_p.astype(mxu_dtype), b_p))
        prev_pad = out_pad
    true_out_dims = tuple(w.shape[0] for (w, _) in params)
    return prepped, true_out_dims


@functools.partial(
    jax.jit,
    static_argnames=("true_out_dims", "out_dim", "zerocenter", "batch_tile"))
def qnetwork_forward(x, prepped, *, true_out_dims, out_dim,
                     zerocenter=False, batch_tile=512):
    """Fused Pallas MLP forward. x: (B, input_dim) f32. Returns (B, out_dim) f32."""
    B, in_f = x.shape
    num_layers = len(prepped)
    out_pad = prepped[-1][1].shape[1]
    mxu_dtype = prepped[0][0].dtype

    # Batch tile: as large as reasonable, multiple of 8 (or the full batch).
    tb = B if B <= batch_tile else batch_tile
    grid = (pl.cdiv(B, tb),)

    flat_inputs = [x]
    in_specs = [pl.BlockSpec((tb, in_f), lambda i: (i, 0))]       # streamed activations
    for (w, b) in prepped:
        flat_inputs += [w, b]
        in_specs += [pl.BlockSpec(w.shape, lambda i: (0, 0)),     # resident weights
                     pl.BlockSpec(b.shape, lambda i: (0, 0))]     # resident bias
    out_spec = pl.BlockSpec((tb, out_pad), lambda i: (i, 0))      # lane-dense output slab

    # Advisory cost estimate for the XLA scheduler.
    flops = 0
    bytes_acc = x.size * x.dtype.itemsize + B * out_pad * 4
    for (w, b) in prepped:
        flops += 2 * B * w.shape[0] * w.shape[1]
        bytes_acc += w.size * w.dtype.itemsize + b.size * b.dtype.itemsize

    # VMEM budget: double-buffered activation tiles + resident params + live f32/bf16
    # intermediates. Capped well under v7x's 64 MiB physical VMEM.
    widest = max(w.shape[1] for (w, _) in prepped)
    vmem_needed = 2 * tb * in_f * 4 + 2 * tb * out_pad * 4 + 6 * tb * widest * 4
    for (w, b) in prepped:
        vmem_needed += w.size * w.dtype.itemsize + b.size * 4
    vmem_limit = int(min(max(2 * vmem_needed, 16 * 1024 * 1024), 48 * 1024 * 1024))

    kernel = _make_mlp_kernel(num_layers, zerocenter, true_out_dims, mxu_dtype)
    out_padded = pl.pallas_call(
        kernel,
        out_shape=jax.ShapeDtypeStruct((B, out_pad), jnp.float32),
        grid=grid,
        in_specs=in_specs,
        out_specs=out_spec,
        compiler_params=pltpu.CompilerParams(
            dimension_semantics=("parallel",),
            vmem_limit_bytes=vmem_limit),
        cost_estimate=pl.CostEstimate(flops=flops, transcendentals=0,
                                      bytes_accessed=bytes_acc),
    )(*flat_inputs)

    return out_padded[:, :out_dim]


def qnetwork_reference(x, params, zerocenter=False):
    """Pure-JAX reference matching the PyTorch forward semantics exactly."""
    h = x
    for i, (w, b) in enumerate(params):
        h = h @ w.T + b
        if i < len(params) - 1:
            if zerocenter:
                h = h - h.mean(axis=1, keepdims=True)
            h = jnp.maximum(h, 0.0)
            if zerocenter:
                h = h - h.mean(axis=1, keepdims=True)
    return h


if __name__ == "__main__":
    # Small shapes consistent with the module: QNetwork(input=16, output=4, hiddens=[64])
    batch, input_dim, output_dim = 8, 16, 4
    hiddens = [64]

    key = jax.random.PRNGKey(0)
    key, kx = jax.random.split(key)
    x = jax.random.normal(kx, (batch, input_dim), jnp.float32)
    params = init_qnetwork_params(key, input_dim, output_dim, hiddens)

    prepped_f32, true_dims = prepare_params(params, mxu_dtype=jnp.float32)
    prepped_bf16, _ = prepare_params(params, mxu_dtype=jnp.bfloat16)

    ok = True
    for zc in (False, True):
        ref = qnetwork_reference(x, params, zerocenter=zc)

        # Exact path (f32 MXU operands): tight tolerance.
        out32 = jax.block_until_ready(
            qnetwork_forward(x, prepped_f32, true_out_dims=true_dims,
                             out_dim=output_dim, zerocenter=zc))
        ok &= bool(jnp.allclose(out32, ref, atol=1e-5, rtol=1e-5))

        # Fast path (bf16 MXU operands, f32 accumulation): loose tolerance.
        out16 = jax.block_until_ready(
            qnetwork_forward(x, prepped_bf16, true_out_dims=true_dims,
                             out_dim=output_dim, zerocenter=zc))
        ok &= bool(jnp.allclose(out16, ref, atol=3e-2, rtol=3e-2))

    # Exercise the multi-step pipelined grid (partial last batch tile) at a modest size.
    xb = jax.random.normal(jax.random.PRNGKey(1), (528, input_dim), jnp.float32)
    refb = qnetwork_reference(xb, params, zerocenter=True)
    outb = jax.block_until_ready(
        qnetwork_forward(xb, prepped_bf16, true_out_dims=true_dims,
                         out_dim=output_dim, zerocenter=True, batch_tile=128))
    ok &= bool(jnp.allclose(outb, refb, atol=3e-2, rtol=3e-2))

    if ok:
        print("KERNEL_OK")
</pallas_src>

<mosaic_0001>
module attributes {stable_mosaic.version = 11 : i64} {
  func.func @kernel(%arg0: i32, %arg1: memref<8x16xf32, #tpu.memory_space<vmem>>, %arg2: memref<16x128xf32, #tpu.memory_space<vmem>>, %arg3: memref<1x128xf32, #tpu.memory_space<vmem>>, %arg4: memref<128x128xf32, #tpu.memory_space<vmem>>, %arg5: memref<1x128xf32, #tpu.memory_space<vmem>>, %arg6: memref<8x128xf32, #tpu.memory_space<vmem>>) attributes {dimension_semantics = [#tpu.dimension_semantics<parallel>], iteration_bounds = array<i64: 1>, scalar_prefetch = 0 : i64, scratch_operands = 0 : i64, tpu.core_type = #tpu.core_type<tc>, window_params = [{transform_indices = @transform_0, window_bounds = array<i64: 8, 16>}, {pipeline_mode = #tpu.pipeline_mode<synchronous>, transform_indices = @transform_1, window_bounds = array<i64: 16, 128>}, {pipeline_mode = #tpu.pipeline_mode<synchronous>, transform_indices = @transform_2, window_bounds = array<i64: 1, 128>}, {pipeline_mode = #tpu.pipeline_mode<synchronous>, transform_indices = @transform_3, window_bounds = array<i64: 128, 128>}, {pipeline_mode = #tpu.pipeline_mode<synchronous>, transform_indices = @transform_4, window_bounds = array<i64: 1, 128>}, {transform_indices = @transform_5, window_bounds = array<i64: 8, 128>}]} {
    %c0 = arith.constant 0 : index
    %c0_0 = arith.constant 0 : index
    %0 = vector.load %arg1[%c0, %c0_0] : memref<8x16xf32, #tpu.memory_space<vmem>>, vector<8x16xf32>
    %c0_1 = arith.constant 0 : index
    %c0_2 = arith.constant 0 : index
    %1 = vector.load %arg2[%c0_1, %c0_2] : memref<16x128xf32, #tpu.memory_space<vmem>>, vector<16x128xf32>
    %c0_3 = arith.constant 0 : index
    %c0_4 = arith.constant 0 : index
    %2 = vector.load %arg3[%c0_3, %c0_4] : memref<1x128xf32, #tpu.memory_space<vmem>>, vector<1x128xf32>
    %cst = arith.constant dense<0.000000e+00> : vector<8x128xf32>
    %3 = tpu.matmul %0, %1, %cst {dimension_numbers = #tpu.dot_dimension_numbers<[1], [0], [0], [1], [0, 0, 1, 1], [], []>} : vector<8x16xf32>, vector<16x128xf32>, vector<8x128xf32> -> vector<8x128xf32>
    %4 = vector.broadcast %2 : vector<1x128xf32> to vector<8x128xf32>
    %5 = arith.addf %3, %4 : vector<8x128xf32>
    %cst_5 = arith.constant 0.000000e+00 : f32
    %6 = vector.broadcast %cst_5 : f32 to vector<8x128xf32>
    %7 = arith.maximumf %5, %6 : vector<8x128xf32>
    %c0_6 = arith.constant 0 : index
    %c0_7 = arith.constant 0 : index
    %8 = vector.load %arg4[%c0_6, %c0_7] : memref<128x128xf32, #tpu.memory_space<vmem>>, vector<128x128xf32>
    %c0_8 = arith.constant 0 : index
    %c0_9 = arith.constant 0 : index
    %9 = vector.load %arg5[%c0_8, %c0_9] : memref<1x128xf32, #tpu.memory_space<vmem>>, vector<1x128xf32>
    %cst_10 = arith.constant dense<0.000000e+00> : vector<8x128xf32>
    %10 = tpu.matmul %7, %8, %cst_10 {dimension_numbers = #tpu.dot_dimension_numbers<[1], [0], [0], [1], [0, 0, 1, 1], [], []>} : vector<8x128xf32>, vector<128x128xf32>, vector<8x128xf32> -> vector<8x128xf32>
    %11 = vector.broadcast %9 : vector<1x128xf32> to vector<8x128xf32>
    %12 = arith.addf %10, %11 : vector<8x128xf32>
    %c0_11 = arith.constant 0 : index
    %c0_12 = arith.constant 0 : index
    %13 = vector.load %arg6[%c0_11, %c0_12] : memref<8x128xf32, #tpu.memory_space<vmem>>, vector<8x128xf32>
    tpu.vector_store %arg6[%c0_11, %c0_12], %12 {strides = array<i32>} : memref<8x128xf32, #tpu.memory_space<vmem>>, vector<8x128xf32>,
    return
  }
  func.func @transform_0(%arg0: i32) -> (i32, i32) {
    %c0_i32 = arith.constant 0 : i32
    %c0_i32_0 = arith.constant 0 : i32
    return %arg0, %c0_i32 : i32, i32
  }
  func.func @transform_1(%arg0: i32) -> (i32, i32) {
    %c0_i32 = arith.constant 0 : i32
    %c0_i32_0 = arith.constant 0 : i32
    %c0_i32_1 = arith.constant 0 : i32
    return %c0_i32, %c0_i32_0 : i32, i32
  }
  func.func @transform_2(%arg0: i32) -> (i32, i32) {
    %c0_i32 = arith.constant 0 : i32
    %c0_i32_0 = arith.constant 0 : i32
    %c0_i32_1 = arith.constant 0 : i32
    return %c0_i32, %c0_i32_0 : i32, i32
  }
  func.func @transform_3(%arg0: i32) -> (i32, i32) {
    %c0_i32 = arith.constant 0 : i32
    %c0_i32_0 = arith.constant 0 : i32
    %c0_i32_1 = arith.constant 0 : i32
    return %c0_i32, %c0_i32_0 : i32, i32
  }
  func.func @transform_4(%arg0: i32) -> (i32, i32) {
    %c0_i32 = arith.constant 0 : i32
    %c0_i32_0 = arith.constant 0 : i32
    %c0_i32_1 = arith.constant 0 : i32
    return %c0_i32, %c0_i32_0 : i32, i32
  }
  func.func @transform_5(%arg0: i32) -> (i32, i32) {
    %c0_i32 = arith.constant 0 : i32
    %c0_i32_0 = arith.constant 0 : i32
    return %arg0, %c0_i32 : i32, i32
  }
}

</mosaic_0001>

<llo_original>
// kernel: qnetwork_forward.1
$region0: #{qnetwork_forward.1}
  #allocation0 [shape = 'u32[]', space=smem, size = 0x4, offset = 0x4, fixed_abs, tag = 'smem constant byte address 0x4 - core index']
  #allocation1 [shape = 'u32[144,128]{1,0:T(1,128)}', space=vmem, size = 0x12000, scoped, tag = 'internal scratch']
  %s0 = inlined_call_operand.hbm [shape: f32[8,16], index: 0, kind: input, shape index: {}]
  %s1 = inlined_call_operand.hbm [shape: f32[16,128], index: 1, kind: input, shape index: {}]
  %s2 = inlined_call_operand.vmem [shape: f32[1,128], index: 2, kind: input, shape index: {}]
  %s3 = inlined_call_operand.hbm [shape: f32[128,128], index: 3, kind: input, shape index: {}]
  %s4 = inlined_call_operand.vmem [shape: f32[1,128], index: 4, kind: input, shape index: {}]
  %s5 = inlined_call_operand.vmem [shape: f32[8,128], index: 5, kind: output, shape index: {}]
  %s6 = sld [smem:[#allocation0]]
  $region42: #{qnetwork_forward.1} parent=0
    _
  %s8 = ssub.s32 1, %s6
  %s9 = scalar_select 0, %s8, %s6
  $region1: #{qnetwork_forward.1} parent=0
    #allocation2 [shape = 'u8[4096]{0}', space=vmem, size = 0x1000, scoped, tag = 'input window, operand 0, single buffered']
    #allocation3 [shape = 's32[1]{0}', space=sflag, size = 0x4, scoped, tag = 'scoped memory for qnetwork_forward.1']
    #allocation4 [shape = 'u8[8192]{0}', space=vmem, size = 0x2000, scoped, tag = 'input window, operand 1, single buffered']
    #allocation5 [shape = 's32[1]{0}', space=sflag, size = 0x4, scoped, tag = 'scoped memory for qnetwork_forward.1']
    #allocation6 [shape = 'u8[65536]{0}', space=vmem, size = 0x10000, scoped, tag = 'input window, operand 3, single buffered']
    %10 = vsyncpa [#allocation3], 0
    %11 = vsyncpa [#allocation5], 0
    // Predicated region
    $region2: #{qnetwork_forward.1} parent=1 // pred_check
      _
    $region3: #{qnetwork_forward.1} parent=1 // pred_check_branch
      %13 = sbr.rel (0) target = $region5
    $region4: #{qnetwork_forward.1} parent=1 // pred_region
      %s15 = ssub.s32 128, 128
      %16 = vsyncadd [#allocation3], %s15
      %s18 = sshll.u32 [#allocation2], 4
      %s19 = int_to_ptr.vmem [resolvable:$true] %s18
      %21 = dma.hbm_to_vmem [thread:$0]  %s0, 128, %s19, [#allocation3]
    $region5: #{qnetwork_forward.1} parent=1 // pred_fallthru
      _
    // Predicated region
    $region6: #{qnetwork_forward.1} parent=1 // pred_check
      _
    $region7: #{qnetwork_forward.1} parent=1 // pred_check_branch
      %23 = sbr.rel (0) target = $region9
    $region8: #{qnetwork_forward.1} parent=1 // pred_region
      %s25 = ssub.s32 256, 256
      %26 = vsyncadd [#allocation5], %s25
      %s27 = sshll.u32 [#allocation4], 4
      %s28 = int_to_ptr.vmem [resolvable:$true] %s27
      %33 = dma.hbm_to_vmem [thread:$0]  %s1, 256, %s28, [#allocation5], 128, 128, 8
    $region9: #{qnetwork_forward.1} parent=1 // pred_fallthru
      _
    // Predicated region
    $region10: #{qnetwork_forward.1} parent=1 // pred_check
      _
    $region11: #{qnetwork_forward.1} parent=1 // pred_check_branch
      %35 = sbr.rel (0) target = $region13
    $region12: #{qnetwork_forward.1} parent=1 // pred_region
      _
    $region13: #{qnetwork_forward.1} parent=1 // pred_fallthru
      _
    // Predicated region
    $region14: #{qnetwork_forward.1} parent=1 // pred_check
      _
    $region15: #{qnetwork_forward.1} parent=1 // pred_check_branch
      %37 = sbr.rel (0) target = $region17
    $region16: #{qnetwork_forward.1} parent=1 // pred_region
      %s39 = ssub.s32 2048, 2048
      %40 = vsyncadd [#allocation5], %s39
      %s41 = sshll.u32 [#allocation6], 4
      %s42 = int_to_ptr.vmem [resolvable:$true] %s41
      %47 = dma.hbm_to_vmem [thread:$0]  %s3, 2048, %s42, [#allocation5], 128, 128, 8
    $region17: #{qnetwork_forward.1} parent=1 // pred_fallthru
      _
    // Predicated region
    $region18: #{qnetwork_forward.1} parent=1 // pred_check
      _
    $region19: #{qnetwork_forward.1} parent=1 // pred_check_branch
      %49 = sbr.rel (0) target = $region21
    $region20: #{qnetwork_forward.1} parent=1 // pred_region
      _
    $region21: #{qnetwork_forward.1} parent=1 // pred_fallthru
      _
    // Predicated region
    $region22: #{qnetwork_forward.1} parent=1 // pred_check
      _
    $region23: #{qnetwork_forward.1} parent=1 // pred_check_branch
      %51 = sbr.rel (0) target = $region25
    $region24: #{qnetwork_forward.1} parent=1 // pred_region
      %52 = dma.done [#allocation3], 128
    $region25: #{qnetwork_forward.1} parent=1 // pred_fallthru
      _
    // Predicated region
    $region26: #{qnetwork_forward.1} parent=1 // pred_check
      _
    $region27: #{qnetwork_forward.1} parent=1 // pred_check_branch
      %54 = sbr.rel (0) target = $region29
    $region28: #{qnetwork_forward.1} parent=1 // pred_region
      %55 = dma.done [#allocation5], 256
    $region29: #{qnetwork_forward.1} parent=1 // pred_fallthru
      _
    // Predicated region
    $region30: #{qnetwork_forward.1} parent=1 // pred_check
      _
    $region31: #{qnetwork_forward.1} parent=1 // pred_check_branch
      %57 = sbr.rel (0) target = $region33
    $region32: #{qnetwork_forward.1} parent=1 // pred_region
      %58 = dma.done [#allocation5], 2048
    $region33: #{qnetwork_forward.1} parent=1 // pred_fallthru
      _
    %v59 = vld [vmem:[#allocation2] sm:$0xff]
    %v60 = vld [vmem:[#allocation4] sm:$0xff]
    %v61 = vld [vmem:[#allocation4 + $0x8] sm:$0xff]
    %v62 = vld [vmem:[%s2] sm:$0x1]
    %v64 = vlaneseq
    %v65 = vshrl.u32 %v64, 7
    %v66 = vsub.s32 0, %v65
    %v67 = vrot.slane %v62, %v66
    %vm69 = vcmask 130048
    %v71 = vsel %vm69, %v59, 0
    %73 = vmatprep.subr.mxu0 0.0
    %74 = vmatpush1.msra.mxu0 0.0
    %75 = vmatprep.subr.mxu0 0.0
    %76 = vmatpush1.msra.mxu0 0.0
    %77 = vmatprep.subr.mxu0 0.0
    %78 = vmatpush1.msra.mxu0 0.0
    %79 = vmatprep.subr.mxu0 0.0
    %80 = vmatpush1.msra.mxu0 0.0
    %81 = vmatprep.subr.mxu0 0.0
    %82 = vmatpush1.msra.mxu0 0.0
    %83 = vmatprep.subr.mxu0 0.0
    %84 = vmatpush1.msra.mxu0 0.0
    %85 = vmatprep.subr.mxu0 0.0
    %86 = vmatpush1.msra.mxu0 0.0
    %87 = vmatprep.subr.mxu0 0.0
    %88 = vmatpush1.msra.mxu0 0.0
    %89 = vmatprep.subr.mxu0 0.0
    %90 = vmatpush1.msra.mxu0 0.0
    %91 = vmatprep.subr.mxu0 0.0
    %92 = vmatpush1.msra.mxu0 0.0
    %93 = vmatprep.subr.mxu0 0.0
    %94 = vmatpush1.msra.mxu0 0.0
    %95 = vmatprep.subr.mxu0 0.0
    %96 = vmatpush1.msra.mxu0 0.0
    %97 = vmatprep.subr.mxu0 0.0
    %98 = vmatpush1.msra.mxu0 0.0
    %99 = vmatprep.subr.mxu0 0.0
    %100 = vmatpush1.msra.mxu0 0.0
    %101 = vmatprep.subr.mxu0 0.0
    %102 = vmatpush1.msra.mxu0 %v61
    %103 = vmatprep.subr.mxu0 0.0
    %104 = vmatpush1.msra.mxu0 %v60
    %105 = vmatprep.subr.mxu0 0.0
    %106 = vmatpush2.msra.mxu0 0.0
    %107 = vmatprep.subr.mxu0 0.0
    %108 = vmatpush2.msra.mxu0 0.0
    %109 = vmatprep.subr.mxu0 0.0
    %110 = vmatpush2.msra.mxu0 0.0
    %111 = vmatprep.subr.mxu0 0.0
    %112 = vmatpush2.msra.mxu0 0.0
    %113 = vmatprep.subr.mxu0 0.0
    %114 = vmatpush2.msra.mxu0 0.0
    %115 = vmatprep.subr.mxu0 0.0
    %116 = vmatpush2.msra.mxu0 0.0
    %117 = vmatprep.subr.mxu0 0.0
    %118 = vmatpush2.msra.mxu0 0.0
    %119 = vmatprep.subr.mxu0 0.0
    %120 = vmatpush2.msra.mxu0 0.0
    %121 = vmatprep.subr.mxu0 0.0
    %122 = vmatpush2.msra.mxu0 0.0
    %123 = vmatprep.subr.mxu0 0.0
    %124 = vmatpush2.msra.mxu0 0.0
    %125 = vmatprep.subr.mxu0 0.0
    %126 = vmatpush2.msra.mxu0 0.0
    %127 = vmatprep.subr.mxu0 0.0
    %128 = vmatpush2.msra.mxu0 0.0
    %129 = vmatprep.subr.mxu0 0.0
    %130 = vmatpush2.msra.mxu0 0.0
    %131 = vmatprep.subr.mxu0 0.0
    %132 = vmatpush2.msra.mxu0 0.0
    %133 = vmatprep.subr.mxu0 0.0
    %134 = vmatpush2.msra.mxu0 0.0
    %135 = vmatprep.subr.mxu0 0.0
    %136 = vmatpush2.msra.mxu0 0.0
    %137 = vmatprep.mubr.f32.mxu0 0.0
    %138 = vmatmul.mubr.f32.gmra.mxu0 %v71
    %v139 = vpop.f32.mrf.mxu0
    %v140 = vadd.f32 %v67, %v139
    %v141 = vpop.f32.mrf.mxu0
    %142 = vdwg.mxu0
    %v143 = vmax.f32 %v140, 0.0
    %v144 = vld [vmem:[#allocation6] sm:$0xff]
    %v145 = vld [vmem:[#allocation6 + $0x8] sm:$0xff]
    %v146 = vld [vmem:[#allocation6 + $0x10] sm:$0xff]
    %v147 = vld [vmem:[#allocation6 + $0x18] sm:$0xff]
    %v148 = vld [vmem:[#allocation6 + $0x20] sm:$0xff]
    %v149 = vld [vmem:[#allocation6 + $0x28] sm:$0xff]
    %v150 = vld [vmem:[#allocation6 + $0x30] sm:$0xff]
    %v151 = vld [vmem:[#allocation6 + $0x38] sm:$0xff]
    %v152 = vld [vmem:[#allocation6 + $0x40] sm:$0xff]
    %v153 = vld [vmem:[#allocation6 + $0x48] sm:$0xff]
    %v154 = vld [vmem:[#allocation6 + $0x50] sm:$0xff]
    %v155 = vld [vmem:[#allocation6 + $0x58] sm:$0xff]
    %v156 = vld [vmem:[#allocation6 + $0x60] sm:$0xff]
    %v157 = vld [vmem:[#allocation6 + $0x68] sm:$0xff]
    %v158 = vld [vmem:[#allocation6 + $0x70] sm:$0xff]
    %v159 = vld [vmem:[#allocation6 + $0x78] sm:$0xff]
    %v160 = vld [vmem:[%s4] sm:$0x1]
    %v162 = vlaneseq
    %v163 = vshrl.u32 %v162, 7
    %v164 = vsub.s32 0, %v163
    %v165 = vrot.slane %v160, %v164
    %167 = vmatprep.subr.mxu0 0.0
    %168 = vmatpush1.msra.mxu0 %v159
    %169 = vmatprep.subr.mxu0 0.0
    %170 = vmatpush1.msra.mxu0 %v158
    %171 = vmatprep.subr.mxu0 0.0
    %172 = vmatpush1.msra.mxu0 %v157
    %173 = vmatprep.subr.mxu0 0.0
    %174 = vmatpush1.msra.mxu0 %v156
    %175 = vmatprep.subr.mxu0 0.0
    %176 = vmatpush1.msra.mxu0 %v155
    %177 = vmatprep.subr.mxu0 0.0
    %178 = vmatpush1.msra.mxu0 %v154
    %179 = vmatprep.subr.mxu0 0.0
    %180 = vmatpush1.msra.mxu0 %v153
    %181 = vmatprep.subr.mxu0 0.0
    %182 = vmatpush1.msra.mxu0 %v152
    %183 = vmatprep.subr.mxu0 0.0
    %184 = vmatpush1.msra.mxu0 %v151
    %185 = vmatprep.subr.mxu0 0.0
    %186 = vmatpush1.msra.mxu0 %v150
    %187 = vmatprep.subr.mxu0 0.0
    %188 = vmatpush1.msra.mxu0 %v149
    %189 = vmatprep.subr.mxu0 0.0
    %190 = vmatpush1.msra.mxu0 %v148
    %191 = vmatprep.subr.mxu0 0.0
    %192 = vmatpush1.msra.mxu0 %v147
    %193 = vmatprep.subr.mxu0 0.0
    %194 = vmatpush1.msra.mxu0 %v146
    %195 = vmatprep.subr.mxu0 0.0
    %196 = vmatpush1.msra.mxu0 %v145
    %197 = vmatprep.subr.mxu0 0.0
    %198 = vmatpush1.msra.mxu0 %v144
    %199 = vmatprep.subr.mxu0 0.0
    %200 = vmatpush2.msra.mxu0 0.0
    %201 = vmatprep.subr.mxu0 0.0
    %202 = vmatpush2.msra.mxu0 0.0
    %203 = vmatprep.subr.mxu0 0.0
    %204 = vmatpush2.msra.mxu0 0.0
    %205 = vmatprep.subr.mxu0 0.0
    %206 = vmatpush2.msra.mxu0 0.0
    %207 = vmatprep.subr.mxu0 0.0
    %208 = vmatpush2.msra.mxu0 0.0
    %209 = vmatprep.subr.mxu0 0.0
    %210 = vmatpush2.msra.mxu0 0.0
    %211 = vmatprep.subr.mxu0 0.0
    %212 = vmatpush2.msra.mxu0 0.0
    %213 = vmatprep.subr.mxu0 0.0
    %214 = vmatpush2.msra.mxu0 0.0
    %215 = vmatprep.subr.mxu0 0.0
    %216 = vmatpush2.msra.mxu0 0.0
    %217 = vmatprep.subr.mxu0 0.0
    %218 = vmatpush2.msra.mxu0 0.0
    %219 = vmatprep.subr.mxu0 0.0
    %220 = vmatpush2.msra.mxu0 0.0
    %221 = vmatprep.subr.mxu0 0.0
    %222 = vmatpush2.msra.mxu0 0.0
    %223 = vmatprep.subr.mxu0 0.0
    %224 = vmatpush2.msra.mxu0 0.0
    %225 = vmatprep.subr.mxu0 0.0
    %226 = vmatpush2.msra.mxu0 0.0
    %227 = vmatprep.subr.mxu0 0.0
    %228 = vmatpush2.msra.mxu0 0.0
    %229 = vmatprep.subr.mxu0 0.0
    %230 = vmatpush2.msra.mxu0 0.0
    %231 = vmatprep.mubr.f32.mxu0 0.0
    %232 = vmatmul.mubr.f32.gmra.mxu0 %v143
    %v233 = vpop.f32.mrf.mxu0
    %v234 = vadd.f32 %v165, %v233
    %v235 = vpop.f32.mrf.mxu0
    %236 = vdwg.mxu0
    %237 = vst [vmem:[%s5] sm:$0xff] %v234
    // Predicated region
    $region34: #{qnetwork_forward.1} parent=1 // pred_check
      _
    $region35: #{qnetwork_forward.1} parent=1 // pred_check_branch
      %239 = sbr.rel (0) target = $region37
    $region36: #{qnetwork_forward.1} parent=1 // pred_region
      _
    $region37: #{qnetwork_forward.1} parent=1 // pred_fallthru
      _
    // Predicated region
    $region38: #{qnetwork_forward.1} parent=1 // pred_check
      _
    $region39: #{qnetwork_forward.1} parent=1 // pred_check_branch
      %241 = sbr.rel (0) target = $region41
    $region40: #{qnetwork_forward.1} parent=1 // pred_region
      _
    $region41: #{qnetwork_forward.1} parent=1 // pred_fallthru
      _
    %242 = vsyncpa [#allocation3], 1
    %243 = vsyncpa [#allocation5], 1

</llo_original>
